<compile_context>
chip_gen: v7x
topology: tpu7x:2x2x1
jax: 0.10.0
libtpu: 0.0.40
codegen_flags: <defaults>
</compile_context>

<pallas_src>
import functools
import numpy as np
import jax
import jax.numpy as jnp
from jax.experimental import pallas as pl
from jax.experimental.pallas import tpu as pltpu

NEG_SLOPE = 0.01   # F.leaky_relu default
BN_EPS = 1e-5      # nn.BatchNorm1d default
LANE = 128
SUBLANE = 8


def _round_up(x, m):
    return (x + m - 1) // m * m


def _leaky_relu(x):
    return jnp.where(x > 0, x, NEG_SLOPE * x)


def _critic_kernel(state_ref, action_ref, w1_ref, w2s_ref, w2a_ref, vec_ref,
                   out_ref, *, h1p, h2p):
    # Activations in f32; only MXU operands are bf16 (f32 accumulation).
    x = state_ref[...]            # (bm, S)  f32
    a = action_ref[...]           # (bm, A)  f32
    vecs = vec_ref[...]           # (8, P)   f32 packed small params

    b1 = vecs[0:1, :h1p]          # fc1 bias with BN shift folded in
    b2 = vecs[1:2, :h2p]
    w3 = vecs[2:3, :h2p]          # fc3 weight as a single lane-row
    b3 = vecs[3:4, 0:1]

    # fc1 (BatchNorm already folded into w1/b1) + leaky_relu
    h1 = jnp.dot(x.astype(jnp.bfloat16), w1_ref[...],
                 preferred_element_type=jnp.float32) + b1
    h1 = _leaky_relu(h1)

    # concat(h1, action) @ W2  ==  h1 @ W2s + a @ W2a
    h2 = (jnp.dot(h1.astype(jnp.bfloat16), w2s_ref[...],
                  preferred_element_type=jnp.float32)
          + jnp.dot(a.astype(jnp.bfloat16), w2a_ref[...],
                    preferred_element_type=jnp.float32)
          + b2)
    h2 = _leaky_relu(h2)

    # fc3 (single output column): VPU multiply + cross-lane reduce (f32),
    # avoids an MXU push with 127/255 idle columns.
    q = jnp.sum(h2 * w3, axis=-1, keepdims=True) + b3        # (bm, 1)

    # Lane-dense output slab (unmasked stores); wrapper slices column 0.
    out_ref[...] = jnp.broadcast_to(q, out_ref.shape).astype(out_ref.dtype)


def critic_forward(state, action, params, *, block_m=128):
    """Critic forward pass: BN-stat prep in the wrapper, rest in one pallas_call."""
    batch, state_size = state.shape
    action_size = action.shape[1]
    h1p = params["w1"].shape[1]
    h2p = params["w2s_bf16"].shape[1]
    P = max(h1p, h2p, LANE)

    xf = state.astype(jnp.float32)
    af = action.astype(jnp.float32)

    # --- BatchNorm1d training-mode stats (batch mean, biased variance),
    #     folded into fc1 so the kernel's batch tiles stay independent. ---
    mean = jnp.mean(xf, axis=0)
    var = jnp.mean(jnp.square(xf - mean[None, :]), axis=0)
    scale = params["bn_gamma"] * jax.lax.rsqrt(var + BN_EPS)
    shift = params["bn_beta"] - mean * scale
    w1_eff = (params["w1"] * scale[:, None]).astype(jnp.bfloat16)   # (S, h1p)
    b1_eff = shift @ params["w1"] + params["b1"]                    # (h1p,)

    # --- Pack all 1-row parameters into one small f32 slab (one DMA). ---
    vecs = jnp.zeros((SUBLANE, P), jnp.float32)
    vecs = vecs.at[0, :h1p].set(b1_eff)
    vecs = vecs.at[1, :h2p].set(params["b2"])
    vecs = vecs.at[2, :h2p].set(params["w3"])
    vecs = vecs.at[3, 0].set(params["b3"])

    # --- Batch tiling: sublane-aligned M tile, zero-pad extra rows. ---
    pb = _round_up(batch, SUBLANE)
    bm = min(block_m, pb)
    pb = _round_up(pb, bm)
    state_p = jnp.pad(xf, ((0, pb - batch), (0, 0)))
    action_p = jnp.pad(af, ((0, pb - batch), (0, 0)))
    grid = (pb // bm,)

    kernel = functools.partial(_critic_kernel, h1p=h1p, h2p=h2p)

    flops = 2 * pb * (state_size * h1p + h1p * h2p + action_size * h2p + h2p)
    bytes_accessed = (state_p.size * 4 + action_p.size * 4
                      + w1_eff.size * 2
                      + params["w2s_bf16"].size * 2 + params["w2a_bf16"].size * 2
                      + vecs.size * 4 + pb * LANE * 4)

    out = pl.pallas_call(
        kernel,
        out_shape=jax.ShapeDtypeStruct((pb, LANE), jnp.float32),
        grid=grid,
        in_specs=[
            pl.BlockSpec((bm, state_size), lambda i: (i, 0)),       # state tile
            pl.BlockSpec((bm, action_size), lambda i: (i, 0)),      # action tile
            pl.BlockSpec((state_size, h1p), lambda i: (0, 0)),      # w1 (resident)
            pl.BlockSpec((h1p, h2p), lambda i: (0, 0)),             # w2s (resident)
            pl.BlockSpec((action_size, h2p), lambda i: (0, 0)),     # w2a (resident)
            pl.BlockSpec((SUBLANE, P), lambda i: (0, 0)),           # packed vectors
        ],
        out_specs=pl.BlockSpec((bm, LANE), lambda i: (i, 0)),
        compiler_params=pltpu.CompilerParams(
            dimension_semantics=("parallel",)),
        cost_estimate=pl.CostEstimate(
            flops=int(flops), transcendentals=0,
            bytes_accessed=int(bytes_accessed)),
    )(state_p, action_p, w1_eff, params["w2s_bf16"], params["w2a_bf16"], vecs)

    return out[:batch, 0:1]


def init_params(key, state_size, action_size, fc_size):
    """Parameter init mirroring the module (weights stored transposed [in, out],
    hidden/output dims zero-padded to multiples of 128 for lane-dense MXU use)."""
    h1 = 8 * fc_size
    h2 = 4 * fc_size
    h1p = _round_up(h1, LANE)
    h2p = _round_up(h2, LANE)
    keys = jax.random.split(key, 6)

    lim1 = 1.0 / np.sqrt(h1)     # hidden_init quirk: weight.size()[0] = out_features
    lim2 = 1.0 / np.sqrt(h2)
    lim3 = 0.003

    w1 = jax.random.uniform(keys[0], (state_size, h1), jnp.float32, -lim1, lim1)
    w2 = jax.random.uniform(keys[1], (h1 + action_size, h2), jnp.float32, -lim2, lim2)
    w3 = jax.random.uniform(keys[2], (h2,), jnp.float32, -lim3, lim3)

    # nn.Linear default biases: uniform(+-1/sqrt(fan_in))
    b1 = jax.random.uniform(keys[3], (h1,), jnp.float32,
                            -1.0 / np.sqrt(state_size), 1.0 / np.sqrt(state_size))
    b2 = jax.random.uniform(keys[4], (h2,), jnp.float32,
                            -1.0 / np.sqrt(h1 + action_size), 1.0 / np.sqrt(h1 + action_size))
    b3 = jax.random.uniform(keys[5], (), jnp.float32,
                            -1.0 / np.sqrt(h2), 1.0 / np.sqrt(h2))

    w1_p = jnp.pad(w1, ((0, 0), (0, h1p - h1)))
    w2s = jnp.pad(w2[:h1, :], ((0, h1p - h1), (0, h2p - h2)))
    w2a = jnp.pad(w2[h1:, :], ((0, 0), (0, h2p - h2)))

    return {
        "bn_gamma": jnp.ones((state_size,), jnp.float32),
        "bn_beta": jnp.zeros((state_size,), jnp.float32),
        "w1": w1_p, "b1": jnp.pad(b1, (0, h1p - h1)),
        "w2s": w2s, "w2a": w2a, "b2": jnp.pad(b2, (0, h2p - h2)),
        "w3": jnp.pad(w3, (0, h2p - h2)), "b3": b3,
        # bf16 copies used by the kernel (half the DMA bytes for the big operands)
        "w2s_bf16": w2s.astype(jnp.bfloat16),
        "w2a_bf16": w2a.astype(jnp.bfloat16),
    }


def critic_reference(state, action, p):
    """Pure-JAX f32 reference (unfused BN + matmuls) for correctness checking."""
    x = state.astype(jnp.float32)
    mean = jnp.mean(x, axis=0, keepdims=True)
    var = jnp.mean(jnp.square(x - mean), axis=0, keepdims=True)
    x = (x - mean) / jnp.sqrt(var + BN_EPS) * p["bn_gamma"][None, :] + p["bn_beta"][None, :]
    h1 = _leaky_relu(x @ p["w1"] + p["b1"][None, :])
    h2 = _leaky_relu(h1 @ p["w2s"] + action.astype(jnp.float32) @ p["w2a"] + p["b2"][None, :])
    return jnp.sum(h2 * p["w3"][None, :], axis=-1, keepdims=True) + p["b3"]


if __name__ == "__main__":
    # Small, module-consistent shapes: batch=8, state_size=32, action_size=8, fc_size=16
    batch, state_size, action_size, fc_size = 8, 32, 8, 16

    key = jax.random.PRNGKey(0)
    k_state, k_action, k_params = jax.random.split(key, 3)
    state = jax.random.normal(k_state, (batch, state_size), jnp.float32)
    action = jax.random.normal(k_action, (batch, action_size), jnp.float32)
    params = init_params(k_params, state_size, action_size, fc_size)

    out = critic_forward(state, action, params)
    out = jax.block_until_ready(out)

    ref = critic_reference(state, action, params)
    # bf16 MXU operands (f32 accumulation) -> relaxed tolerance vs f32 reference.
    np.testing.assert_allclose(np.asarray(out), np.asarray(ref), rtol=2e-2, atol=1e-3)

    print("KERNEL_OK")
</pallas_src>

<mosaic_0001>
module attributes {stable_mosaic.version = 11 : i64} {
  func.func @_critic_kernel(%arg0: i32, %arg1: memref<8x32xf32, #tpu.memory_space<vmem>>, %arg2: memref<8x8xf32, #tpu.memory_space<vmem>>, %arg3: memref<32x128xbf16, #tpu.memory_space<vmem>>, %arg4: memref<128x128xbf16, #tpu.memory_space<vmem>>, %arg5: memref<8x128xbf16, #tpu.memory_space<vmem>>, %arg6: memref<8x128xf32, #tpu.memory_space<vmem>>, %arg7: memref<8x128xf32, #tpu.memory_space<vmem>>) attributes {dimension_semantics = [#tpu.dimension_semantics<parallel>], iteration_bounds = array<i64: 1>, scalar_prefetch = 0 : i64, scratch_operands = 0 : i64, tpu.core_type = #tpu.core_type<tc>, window_params = [{transform_indices = @transform_0, window_bounds = array<i64: 8, 32>}, {transform_indices = @transform_1, window_bounds = array<i64: 8, 8>}, {pipeline_mode = #tpu.pipeline_mode<synchronous>, transform_indices = @transform_2, window_bounds = array<i64: 32, 128>}, {pipeline_mode = #tpu.pipeline_mode<synchronous>, transform_indices = @transform_3, window_bounds = array<i64: 128, 128>}, {pipeline_mode = #tpu.pipeline_mode<synchronous>, transform_indices = @transform_4, window_bounds = array<i64: 8, 128>}, {pipeline_mode = #tpu.pipeline_mode<synchronous>, transform_indices = @transform_5, window_bounds = array<i64: 8, 128>}, {transform_indices = @transform_6, window_bounds = array<i64: 8, 128>}]} {
    %c0 = arith.constant 0 : index
    %c0_0 = arith.constant 0 : index
    %0 = vector.load %arg1[%c0, %c0_0] : memref<8x32xf32, #tpu.memory_space<vmem>>, vector<8x32xf32>
    %c0_1 = arith.constant 0 : index
    %c0_2 = arith.constant 0 : index
    %1 = vector.load %arg2[%c0_1, %c0_2] : memref<8x8xf32, #tpu.memory_space<vmem>>, vector<8x8xf32>
    %c0_3 = arith.constant 0 : index
    %c0_4 = arith.constant 0 : index
    %2 = vector.load %arg6[%c0_3, %c0_4] : memref<8x128xf32, #tpu.memory_space<vmem>>, vector<8x128xf32>
    %3 = vector.extract_strided_slice %2 {offsets = [0, 0], sizes = [1, 128], strides = [1, 1]} : vector<8x128xf32> to vector<1x128xf32>
    %4 = vector.extract_strided_slice %2 {offsets = [1, 0], sizes = [1, 128], strides = [1, 1]} : vector<8x128xf32> to vector<1x128xf32>
    %5 = vector.extract_strided_slice %2 {offsets = [2, 0], sizes = [1, 128], strides = [1, 1]} : vector<8x128xf32> to vector<1x128xf32>
    %6 = vector.extract_strided_slice %2 {offsets = [3, 0], sizes = [1, 1], strides = [1, 1]} : vector<8x128xf32> to vector<1x1xf32>
    %7 = arith.truncf %0 : vector<8x32xf32> to vector<8x32xbf16>
    %c0_5 = arith.constant 0 : index
    %c0_6 = arith.constant 0 : index
    %8 = vector.load %arg3[%c0_5, %c0_6] : memref<32x128xbf16, #tpu.memory_space<vmem>>, vector<32x128xbf16>
    %cst = arith.constant dense<0.000000e+00> : vector<8x128xf32>
    %9 = tpu.matmul %7, %8, %cst {dimension_numbers = #tpu.dot_dimension_numbers<[1], [0], [0], [1], [0, 0, 1, 1], [], []>} : vector<8x32xbf16>, vector<32x128xbf16>, vector<8x128xf32> -> vector<8x128xf32>
    %10 = vector.broadcast %3 : vector<1x128xf32> to vector<8x128xf32>
    %11 = arith.addf %9, %10 : vector<8x128xf32>
    %cst_7 = arith.constant 0.000000e+00 : f32
    %12 = vector.broadcast %cst_7 : f32 to vector<8x128xf32>
    %13 = arith.cmpf ogt, %11, %12 : vector<8x128xf32>
    %cst_8 = arith.constant 0.00999999977 : f32
    %14 = vector.broadcast %cst_8 : f32 to vector<8x128xf32>
    %15 = arith.mulf %14, %11 : vector<8x128xf32>
    %16 = arith.select %13, %11, %15 : vector<8x128xi1>, vector<8x128xf32>
    %17 = arith.truncf %16 : vector<8x128xf32> to vector<8x128xbf16>
    %c0_9 = arith.constant 0 : index
    %c0_10 = arith.constant 0 : index
    %18 = vector.load %arg4[%c0_9, %c0_10] : memref<128x128xbf16, #tpu.memory_space<vmem>>, vector<128x128xbf16>
    %cst_11 = arith.constant dense<0.000000e+00> : vector<8x128xf32>
    %19 = tpu.matmul %17, %18, %cst_11 {dimension_numbers = #tpu.dot_dimension_numbers<[1], [0], [0], [1], [0, 0, 1, 1], [], []>} : vector<8x128xbf16>, vector<128x128xbf16>, vector<8x128xf32> -> vector<8x128xf32>
    %20 = arith.truncf %1 : vector<8x8xf32> to vector<8x8xbf16>
    %c0_12 = arith.constant 0 : index
    %c0_13 = arith.constant 0 : index
    %21 = vector.load %arg5[%c0_12, %c0_13] : memref<8x128xbf16, #tpu.memory_space<vmem>>, vector<8x128xbf16>
    %cst_14 = arith.constant dense<0.000000e+00> : vector<8x128xf32>
    %22 = tpu.matmul %20, %21, %cst_14 {dimension_numbers = #tpu.dot_dimension_numbers<[1], [0], [0], [1], [0, 0, 1, 1], [], []>} : vector<8x8xbf16>, vector<8x128xbf16>, vector<8x128xf32> -> vector<8x128xf32>
    %23 = arith.addf %19, %22 : vector<8x128xf32>
    %24 = vector.broadcast %4 : vector<1x128xf32> to vector<8x128xf32>
    %25 = arith.addf %23, %24 : vector<8x128xf32>
    %cst_15 = arith.constant 0.000000e+00 : f32
    %26 = vector.broadcast %cst_15 : f32 to vector<8x128xf32>
    %27 = arith.cmpf ogt, %25, %26 : vector<8x128xf32>
    %cst_16 = arith.constant 0.00999999977 : f32
    %28 = vector.broadcast %cst_16 : f32 to vector<8x128xf32>
    %29 = arith.mulf %28, %25 : vector<8x128xf32>
    %30 = arith.select %27, %25, %29 : vector<8x128xi1>, vector<8x128xf32>
    %31 = vector.broadcast %5 : vector<1x128xf32> to vector<8x128xf32>
    %32 = arith.mulf %30, %31 : vector<8x128xf32>
    %cst_17 = arith.constant dense<0.000000e+00> : vector<8xf32>
    %33 = vector.multi_reduction <add>, %32, %cst_17 [1] : vector<8x128xf32> to vector<8xf32>
    %34 = vector.shape_cast %33 : vector<8xf32> to vector<8x1xf32>
    %35 = vector.broadcast %6 : vector<1x1xf32> to vector<8x1xf32>
    %36 = arith.addf %34, %35 : vector<8x1xf32>
    %37 = vector.shape_cast %36 : vector<8x1xf32> to vector<8x1xf32>
    %38 = vector.broadcast %37 : vector<8x1xf32> to vector<8x128xf32>
    %c0_18 = arith.constant 0 : index
    %c0_19 = arith.constant 0 : index
    %39 = vector.load %arg7[%c0_18, %c0_19] : memref<8x128xf32, #tpu.memory_space<vmem>>, vector<8x128xf32>
    tpu.vector_store %arg7[%c0_18, %c0_19], %38 {strides = array<i32>} : memref<8x128xf32, #tpu.memory_space<vmem>>, vector<8x128xf32>,
    return
  }
  func.func @transform_0(%arg0: i32) -> (i32, i32) {
    %c0_i32 = arith.constant 0 : i32
    %c0_i32_0 = arith.constant 0 : i32
    return %arg0, %c0_i32 : i32, i32
  }
  func.func @transform_1(%arg0: i32) -> (i32, i32) {
    %c0_i32 = arith.constant 0 : i32
    %c0_i32_0 = arith.constant 0 : i32
    return %arg0, %c0_i32 : i32, i32
  }
  func.func @transform_2(%arg0: i32) -> (i32, i32) {
    %c0_i32 = arith.constant 0 : i32
    %c0_i32_0 = arith.constant 0 : i32
    %c0_i32_1 = arith.constant 0 : i32
    return %c0_i32, %c0_i32_0 : i32, i32
  }
  func.func @transform_3(%arg0: i32) -> (i32, i32) {
    %c0_i32 = arith.constant 0 : i32
    %c0_i32_0 = arith.constant 0 : i32
    %c0_i32_1 = arith.constant 0 : i32
    return %c0_i32, %c0_i32_0 : i32, i32
  }
  func.func @transform_4(%arg0: i32) -> (i32, i32) {
    %c0_i32 = arith.constant 0 : i32
    %c0_i32_0 = arith.constant 0 : i32
    %c0_i32_1 = arith.constant 0 : i32
    return %c0_i32, %c0_i32_0 : i32, i32
  }
  func.func @transform_5(%arg0: i32) -> (i32, i32) {
    %c0_i32 = arith.constant 0 : i32
    %c0_i32_0 = arith.constant 0 : i32
    %c0_i32_1 = arith.constant 0 : i32
    return %c0_i32, %c0_i32_0 : i32, i32
  }
  func.func @transform_6(%arg0: i32) -> (i32, i32) {
    %c0_i32 = arith.constant 0 : i32
    %c0_i32_0 = arith.constant 0 : i32
    return %arg0, %c0_i32 : i32, i32
  }
}

</mosaic_0001>

<llo_original>
// kernel: tpu_custom_call.1
$region0: #{tpu_custom_call.1}
  #allocation0 [shape = 'u32[]', space=smem, size = 0x4, offset = 0x4, fixed_abs, tag = 'smem constant byte address 0x4 - core index']
  #allocation1 [shape = 'u32[144,128]{1,0:T(1,128)}', space=vmem, size = 0x12000, scoped, tag = 'internal scratch']
  %s0 = inlined_call_operand.hbm [shape: f32[8,32], index: 0, kind: input, shape index: {}]
  %s1 = inlined_call_operand.hbm [shape: f32[8,8], index: 1, kind: input, shape index: {}]
  %s2 = inlined_call_operand.hbm [shape: bf16[32,128], index: 2, kind: input, shape index: {}]
  %s3 = inlined_call_operand.hbm [shape: bf16[128,128], index: 3, kind: input, shape index: {}]
  %s4 = inlined_call_operand.vmem [shape: bf16[8,128], index: 4, kind: input, shape index: {}]
  %s5 = inlined_call_operand.vmem [shape: f32[8,128], index: 5, kind: input, shape index: {}]
  %s6 = inlined_call_operand.hbm [shape: f32[8,128], index: 6, kind: output, shape index: {}]
  %s7 = sld [smem:[#allocation0]]
  $region50: #{tpu_custom_call.1} parent=0
    _
  %s9 = ssub.s32 1, %s7
  %s10 = scalar_select 0, %s9, %s7
  $region1: #{tpu_custom_call.1} parent=0
    #allocation2 [shape = 'u8[4096]{0}', space=vmem, size = 0x1000, scoped, tag = 'input window, operand 0, single buffered']
    #allocation3 [shape = 's32[1]{0}', space=sflag, size = 0x4, scoped, tag = 'scoped memory for tpu_custom_call.1']
    #allocation4 [shape = 's32[1]{0}', space=sflag, size = 0x4, scoped, tag = 'scoped memory for tpu_custom_call.1']
    #allocation5 [shape = 'u8[4096]{0}', space=vmem, size = 0x1000, scoped, tag = 'input window, operand 1, single buffered']
    #allocation6 [shape = 's32[1]{0}', space=sflag, size = 0x4, scoped, tag = 'scoped memory for tpu_custom_call.1']
    #allocation7 [shape = 'u8[8192]{0}', space=vmem, size = 0x2000, scoped, tag = 'input window, operand 2, single buffered']
    #allocation8 [shape = 'u8[32768]{0}', space=vmem, size = 0x8000, scoped, tag = 'input window, operand 3, single buffered']
    #allocation9 [shape = 's32[1]{0}', space=sflag, size = 0x4, scoped, tag = 'scoped memory for tpu_custom_call.1']
    #allocation10 [shape = 'u8[4096]{0}', space=vmem, size = 0x1000, scoped, tag = 'output window, operand 0, single buffered']
    %11 = vsyncpa [#allocation3], 0
    %12 = vsyncpa [#allocation6], 0
    %13 = vsyncpa [#allocation9], 0
    %14 = vsyncpa [#allocation4], 0
    // Predicated region
    $region2: #{tpu_custom_call.1} parent=1 // pred_check
      _
    $region3: #{tpu_custom_call.1} parent=1 // pred_check_branch
      %16 = sbr.rel (0) target = $region5
    $region4: #{tpu_custom_call.1} parent=1 // pred_region
      %s18 = ssub.s32 128, 128
      %19 = vsyncadd [#allocation3], %s18
      %s21 = sshll.u32 [#allocation2], 4
      %s22 = int_to_ptr.vmem [resolvable:$true] %s21
      %24 = dma.hbm_to_vmem [thread:$0]  %s0, 128, %s22, [#allocation3]
    $region5: #{tpu_custom_call.1} parent=1 // pred_fallthru
      _
    // Predicated region
    $region6: #{tpu_custom_call.1} parent=1 // pred_check
      _
    $region7: #{tpu_custom_call.1} parent=1 // pred_check_branch
      %26 = sbr.rel (0) target = $region9
    $region8: #{tpu_custom_call.1} parent=1 // pred_region
      %s28 = ssub.s32 128, 128
      %29 = vsyncadd [#allocation6], %s28
      %s31 = sshll.u32 [#allocation5], 4
      %s32 = int_to_ptr.vmem [resolvable:$true] %s31
      %34 = dma.hbm_to_vmem [thread:$0]  %s1, 128, %s32, [#allocation6]
    $region9: #{tpu_custom_call.1} parent=1 // pred_fallthru
      _
    // Predicated region
    $region10: #{tpu_custom_call.1} parent=1 // pred_check
      _
    $region11: #{tpu_custom_call.1} parent=1 // pred_check_branch
      %36 = sbr.rel (0) target = $region13
    $region12: #{tpu_custom_call.1} parent=1 // pred_region
      %s38 = ssub.s32 256, 256
      %39 = vsyncadd [#allocation6], %s38
      %s40 = sshll.u32 [#allocation7], 4
      %s41 = int_to_ptr.vmem [resolvable:$true] %s40
      %46 = dma.hbm_to_vmem [thread:$0]  %s2, 256, %s41, [#allocation6], 64, 64, 4
    $region13: #{tpu_custom_call.1} parent=1 // pred_fallthru
      _
    // Predicated region
    $region14: #{tpu_custom_call.1} parent=1 // pred_check
      _
    $region15: #{tpu_custom_call.1} parent=1 // pred_check_branch
      %48 = sbr.rel (0) target = $region17
    $region16: #{tpu_custom_call.1} parent=1 // pred_region
      %s50 = ssub.s32 1024, 1024
      %51 = vsyncadd [#allocation9], %s50
      %s52 = sshll.u32 [#allocation8], 4
      %s53 = int_to_ptr.vmem [resolvable:$true] %s52
      %58 = dma.hbm_to_vmem [thread:$0]  %s3, 1024, %s53, [#allocation9], 64, 64, 4
    $region17: #{tpu_custom_call.1} parent=1 // pred_fallthru
      _
    // Predicated region
    $region18: #{tpu_custom_call.1} parent=1 // pred_check
      _
    $region19: #{tpu_custom_call.1} parent=1 // pred_check_branch
      %60 = sbr.rel (0) target = $region21
    $region20: #{tpu_custom_call.1} parent=1 // pred_region
      _
    $region21: #{tpu_custom_call.1} parent=1 // pred_fallthru
      _
    // Predicated region
    $region22: #{tpu_custom_call.1} parent=1 // pred_check
      _
    $region23: #{tpu_custom_call.1} parent=1 // pred_check_branch
      %62 = sbr.rel (0) target = $region25
    $region24: #{tpu_custom_call.1} parent=1 // pred_region
      _
    $region25: #{tpu_custom_call.1} parent=1 // pred_fallthru
      _
    // Predicated region
    $region26: #{tpu_custom_call.1} parent=1 // pred_check
      _
    $region27: #{tpu_custom_call.1} parent=1 // pred_check_branch
      %64 = sbr.rel (0) target = $region29
    $region28: #{tpu_custom_call.1} parent=1 // pred_region
      %65 = dma.done [#allocation3], 128
    $region29: #{tpu_custom_call.1} parent=1 // pred_fallthru
      _
    // Predicated region
    $region30: #{tpu_custom_call.1} parent=1 // pred_check
      _
    $region31: #{tpu_custom_call.1} parent=1 // pred_check_branch
      %67 = sbr.rel (0) target = $region33
    $region32: #{tpu_custom_call.1} parent=1 // pred_region
      %68 = dma.done [#allocation6], 128
    $region33: #{tpu_custom_call.1} parent=1 // pred_fallthru
      _
    // Predicated region
    $region34: #{tpu_custom_call.1} parent=1 // pred_check
      _
    $region35: #{tpu_custom_call.1} parent=1 // pred_check_branch
      %70 = sbr.rel (0) target = $region37
    $region36: #{tpu_custom_call.1} parent=1 // pred_region
      %71 = dma.done [#allocation6], 256
    $region37: #{tpu_custom_call.1} parent=1 // pred_fallthru
      _
    // Predicated region
    $region38: #{tpu_custom_call.1} parent=1 // pred_check
      _
    $region39: #{tpu_custom_call.1} parent=1 // pred_check_branch
      %73 = sbr.rel (0) target = $region41
    $region40: #{tpu_custom_call.1} parent=1 // pred_region
      %74 = dma.done [#allocation9], 1024
    $region41: #{tpu_custom_call.1} parent=1 // pred_fallthru
      _
    %v76 = vld [vmem:[#allocation2] sm:$0xff]
    %v77 = vld [vmem:[#allocation5] sm:$0xff]
    %v78 = vld [vmem:[%s5] sm:$0xff]
    %v79 = vpack.c.bf16 %v76, %v76
    %v80 = vld [vmem:[#allocation7] sm:$0xf]
    %v81 = vld [vmem:[#allocation7 + $0x4] sm:$0xf]
    %v82 = vld [vmem:[#allocation7 + $0x8] sm:$0xf]
    %v83 = vld [vmem:[#allocation7 + $0xc] sm:$0xf]
    %v84 = vlaneseq
    %v85 = vshrl.u32 %v84, 7
    %v86 = vsub.s32 0, %v85
    %v87 = vrot.slane %v78, %v86
    %v92 = vunpack.c.l.b16 %v80
    %v93 = vunpack.c.l.b16 %v81
    %v94 = vunpack.c.l.b16 %v82
    %v95 = vunpack.c.l.b16 %v83
    %v96 = vpack.c.b16 %v93, %v92
    %v97 = vpack.c.b16 %v95, %v94
    %vm100 = vcmask 261120
    %v102 = vsel %vm100, %v79, 0
    %104 = vmatprep.subr.bf16.mxu0 0
    %105 = vmatpush1.bf16.msra.mxu0 %v96
    %106 = vmatprep.subr.bf16.mxu0 0
    %107 = vmatpush1.bf16.msra.mxu0 %v97
    %108 = vmatprep.subr.bf16.mxu0 0
    %109 = vmatpush1.bf16.msra.mxu0 0
    %110 = vmatprep.subr.bf16.mxu0 0
    %111 = vmatpush1.bf16.msra.mxu0 0
    %112 = vmatprep.subr.bf16.mxu0 0
    %113 = vmatpush1.bf16.msra.mxu0 0
    %114 = vmatprep.subr.bf16.mxu0 0
    %115 = vmatpush1.bf16.msra.mxu0 0
    %116 = vmatprep.subr.bf16.mxu0 0
    %117 = vmatpush1.bf16.msra.mxu0 0
    %118 = vmatprep.subr.bf16.mxu0 0
    %119 = vmatpush1.bf16.msra.mxu0 0
    %120 = vmatprep.subr.bf16.mxu0 0
    %121 = vmatpush1.bf16.msra.mxu0 0
    %122 = vmatprep.subr.bf16.mxu0 0
    %123 = vmatpush1.bf16.msra.mxu0 0
    %124 = vmatprep.subr.bf16.mxu0 0
    %125 = vmatpush1.bf16.msra.mxu0 0
    %126 = vmatprep.subr.bf16.mxu0 0
    %127 = vmatpush1.bf16.msra.mxu0 0
    %128 = vmatprep.subr.bf16.mxu0 0
    %129 = vmatpush1.bf16.msra.mxu0 0
    %130 = vmatprep.subr.bf16.mxu0 0
    %131 = vmatpush1.bf16.msra.mxu0 0
    %132 = vmatprep.subr.bf16.mxu0 0
    %133 = vmatpush1.bf16.msra.mxu0 0
    %134 = vmatprep.subr.bf16.mxu0 0
    %135 = vmatpush1.bf16.msra.mxu0 0
    %136 = vmatprep.mubr.bf16.mxu0 0
    %137 = vmatmul.mubr.bf16.gmra.mrb[0].mxu0 %v102
    %v138 = vpop.f32.mrb[0].mxu0
    %v139 = vadd.f32 %v87, %v138
    %v140 = vpop.f32.mrb[0].mxu0
    %v141 = vpop.f32.mrb[0].mxu0
    %v142 = vpop.f32.mrb[0].mxu0
    %143 = vdwg.mxu0
    %vm144 = vcmp.gt.f32.partialorder %v139, 0.0
    %v145 = vmul.f32 %v139, 0.01
    %v146 = vsel %vm144, %v139, %v145
    %v147 = vpack.c.bf16 %v146, %v146
    %v148 = vld [vmem:[#allocation8] sm:$0xf]
    %v149 = vld [vmem:[#allocation8 + $0x4] sm:$0xf]
    %v150 = vld [vmem:[#allocation8 + $0x8] sm:$0xf]
    %v151 = vld [vmem:[#allocation8 + $0xc] sm:$0xf]
    %v152 = vld [vmem:[#allocation8 + $0x10] sm:$0xf]
    %v153 = vld [vmem:[#allocation8 + $0x14] sm:$0xf]
    %v154 = vld [vmem:[#allocation8 + $0x18] sm:$0xf]
    %v155 = vld [vmem:[#allocation8 + $0x1c] sm:$0xf]
    %v156 = vld [vmem:[#allocation8 + $0x20] sm:$0xf]
    %v157 = vld [vmem:[#allocation8 + $0x24] sm:$0xf]
    %v158 = vld [vmem:[#allocation8 + $0x28] sm:$0xf]
    %v159 = vld [vmem:[#allocation8 + $0x2c] sm:$0xf]
    %v160 = vld [vmem:[#allocation8 + $0x30] sm:$0xf]
    %v161 = vld [vmem:[#allocation8 + $0x34] sm:$0xf]
    %v162 = vld [vmem:[#allocation8 + $0x38] sm:$0xf]
    %v163 = vld [vmem:[#allocation8 + $0x3c] sm:$0xf]
    %v164 = vpack.c.bf16 %v77, %v77
    %v165 = vld [vmem:[%s4] sm:$0xf]
    %vm166 = vcmask 64512
    %v168 = vsel %vm166, %v164, 0
    %vm170 = vcmask 1043456
    %v172 = vsel %vm170, %v165, 0
    %174 = vmatprep.subr.bf16.mxu0 0
    %175 = vmatpush1.bf16.msra.mxu0 %v172
    %176 = vmatprep.subr.bf16.mxu0 0
    %177 = vmatpush1.bf16.msra.mxu0 0
    %178 = vmatprep.subr.bf16.mxu0 0
    %179 = vmatpush1.bf16.msra.mxu0 0
    %180 = vmatprep.subr.bf16.mxu0 0
    %181 = vmatpush1.bf16.msra.mxu0 0
    %182 = vmatprep.subr.bf16.mxu0 0
    %183 = vmatpush1.bf16.msra.mxu0 0
    %184 = vmatprep.subr.bf16.mxu0 0
    %185 = vmatpush1.bf16.msra.mxu0 0
    %186 = vmatprep.subr.bf16.mxu0 0
    %187 = vmatpush1.bf16.msra.mxu0 0
    %188 = vmatprep.subr.bf16.mxu0 0
    %189 = vmatpush1.bf16.msra.mxu0 0
    %190 = vmatprep.subr.bf16.mxu0 0
    %191 = vmatpush1.bf16.msra.mxu0 0
    %192 = vmatprep.subr.bf16.mxu0 0
    %193 = vmatpush1.bf16.msra.mxu0 0
    %194 = vmatprep.subr.bf16.mxu0 0
    %195 = vmatpush1.bf16.msra.mxu0 0
    %196 = vmatprep.subr.bf16.mxu0 0
    %197 = vmatpush1.bf16.msra.mxu0 0
    %198 = vmatprep.subr.bf16.mxu0 0
    %199 = vmatpush1.bf16.msra.mxu0 0
    %200 = vmatprep.subr.bf16.mxu0 0
    %201 = vmatpush1.bf16.msra.mxu0 0
    %202 = vmatprep.subr.bf16.mxu0 0
    %203 = vmatpush1.bf16.msra.mxu0 0
    %204 = vmatprep.subr.bf16.mxu0 0
    %205 = vmatpush1.bf16.msra.mxu0 0
    %206 = vmatprep.mubr.bf16.mxu0 0
    %207 = vmatmul.mubr.bf16.gmra.mrb[0].mxu0 %v168
    %v208 = vpop.f32.mrb[0].mxu0
    %v209 = vadd.f32 0.0, %v208
    %v210 = vpop.f32.mrb[0].mxu0
    %v211 = vpop.f32.mrb[0].mxu0
    %v212 = vpop.f32.mrb[0].mxu0
    %213 = vdwg.mxu0
    %v230 = vunpack.c.l.b16 %v148
    %v231 = vunpack.c.l.b16 %v149
    %v232 = vunpack.c.l.b16 %v150
    %v233 = vunpack.c.l.b16 %v151
    %v234 = vunpack.c.l.b16 %v152
    %v235 = vunpack.c.l.b16 %v153
    %v236 = vunpack.c.l.b16 %v154
    %v237 = vunpack.c.l.b16 %v155
    %v238 = vunpack.c.l.b16 %v156
    %v239 = vunpack.c.l.b16 %v157
    %v240 = vunpack.c.l.b16 %v158
    %v241 = vunpack.c.l.b16 %v159
    %v242 = vunpack.c.l.b16 %v160
    %v243 = vunpack.c.l.b16 %v161
    %v244 = vunpack.c.l.b16 %v162
    %v245 = vunpack.c.l.b16 %v163
    %v246 = vpack.c.b16 %v231, %v230
    %v247 = vpack.c.b16 %v233, %v232
    %v248 = vpack.c.b16 %v235, %v234
    %v249 = vpack.c.b16 %v237, %v236
    %v250 = vpack.c.b16 %v239, %v238
    %v251 = vpack.c.b16 %v241, %v240
    %v252 = vpack.c.b16 %v243, %v242
    %v253 = vpack.c.b16 %v245, %v244
    %262 = vmatprep.subr.bf16.mxu0 0
    %263 = vmatpush1.bf16.msra.mxu0 %v246
    %264 = vmatprep.subr.bf16.mxu0 0
    %265 = vmatpush1.bf16.msra.mxu0 %v247
    %266 = vmatprep.subr.bf16.mxu0 0
    %267 = vmatpush1.bf16.msra.mxu0 %v248
    %268 = vmatprep.subr.bf16.mxu0 0
    %269 = vmatpush1.bf16.msra.mxu0 %v249
    %270 = vmatprep.subr.bf16.mxu0 0
    %271 = vmatpush1.bf16.msra.mxu0 %v250
    %272 = vmatprep.subr.bf16.mxu0 0
    %273 = vmatpush1.bf16.msra.mxu0 %v251
    %274 = vmatprep.subr.bf16.mxu0 0
    %275 = vmatpush1.bf16.msra.mxu0 %v252
    %276 = vmatprep.subr.bf16.mxu0 0
    %277 = vmatpush1.bf16.msra.mxu0 %v253
    %278 = vmatprep.subr.bf16.mxu0 0
    %279 = vmatpush1.bf16.msra.mxu0 0
    %280 = vmatprep.subr.bf16.mxu0 0
    %281 = vmatpush1.bf16.msra.mxu0 0
    %282 = vmatprep.subr.bf16.mxu0 0
    %283 = vmatpush1.bf16.msra.mxu0 0
    %284 = vmatprep.subr.bf16.mxu0 0
    %285 = vmatpush1.bf16.msra.mxu0 0
    %286 = vmatprep.subr.bf16.mxu0 0
    %287 = vmatpush1.bf16.msra.mxu0 0
    %288 = vmatprep.subr.bf16.mxu0 0
    %289 = vmatpush1.bf16.msra.mxu0 0
    %290 = vmatprep.subr.bf16.mxu0 0
    %291 = vmatpush1.bf16.msra.mxu0 0
    %292 = vmatprep.subr.bf16.mxu0 0
    %293 = vmatpush1.bf16.msra.mxu0 0
    %294 = vmatprep.mubr.bf16.mxu0 0
    %295 = vmatmul.mubr.bf16.gmra.mrb[0].mxu0 %v147
    %v296 = vpop.f32.mrb[0].mxu0
    %v297 = vadd.f32 %v209, %v296
    %v298 = vpop.f32.mrb[0].mxu0
    %v299 = vpop.f32.mrb[0].mxu0
    %v300 = vpop.f32.mrb[0].mxu0
    %301 = vdwg.mxu0
    %v302 = vlaneseq
    %v303 = vshrl.u32 %v302, 7
    %v304 = vsub.s32 1, %v303
    %v305 = vrot.slane %v78, %v304
    %v306 = vadd.f32 %v297, %v305
    %vm307 = vcmp.gt.f32.partialorder %v306, 0.0
    %v308 = vmul.f32 %v306, 0.01
    %v309 = vsel %vm307, %v306, %v308
    %v310 = vlaneseq
    %v311 = vshrl.u32 %v310, 7
    %v312 = vsub.s32 2, %v311
    %v313 = vrot.slane %v78, %v312
    %v314 = vmul.f32 %v309, %v313
    %315 = vadd.xlane.f32.xlu0 %v314
    %v316 = vpop.xlane.xlu0 %315
    %v317 = vlaneseq
    %v318 = vshrl.u32 %v317, 7
    %v319 = vsub.s32 3, %v318
    %v320 = vrot.slane %v78, %v319
    %v321 = vadd.f32 %v316, %v320
    %323 = vset.pattern.permute.xlu0 0
    %324 = vperm.xlu0 %323, %v321
    %v325 = vpop.permute.xlu0 %324
    %327 = vst [vmem:[#allocation10] sm:$0xff] %v325
    // Predicated region
    $region42: #{tpu_custom_call.1} parent=1 // pred_check
      _
    $region43: #{tpu_custom_call.1} parent=1 // pred_check_branch
      %329 = sbr.rel (0) target = $region45
    $region44: #{tpu_custom_call.1} parent=1 // pred_region
      %s331 = ssub.s32 128, 128
      %332 = vsyncadd [#allocation4], %s331
      %s334 = sshll.u32 [#allocation10], 4
      %s335 = int_to_ptr.vmem [resolvable:$true] %s334
      %337 = dma.vmem_to_hbm [thread:$0]  %s335, 128, %s6, [#allocation4]
    $region45: #{tpu_custom_call.1} parent=1 // pred_fallthru
      _
    // Predicated region
    $region46: #{tpu_custom_call.1} parent=1 // pred_check
      _
    $region47: #{tpu_custom_call.1} parent=1 // pred_check_branch
      %339 = sbr.rel (0) target = $region49
    $region48: #{tpu_custom_call.1} parent=1 // pred_region
      %340 = dma.done [#allocation4], 128
    $region49: #{tpu_custom_call.1} parent=1 // pred_fallthru
      _
    %341 = vsyncpa [#allocation3], 1
    %342 = vsyncpa [#allocation6], 1
    %343 = vsyncpa [#allocation9], 1
    %344 = vsyncpa [#allocation4], 1

</llo_original>
